<compile_context>
chip_gen: v6e
topology: v6e:2x2x1
jax: 0.10.0
libtpu: 0.0.40
codegen_flags: <defaults>
</compile_context>

<pallas_src>
import jax
import jax.numpy as jnp
from jax.experimental import pallas as pl
from jax.experimental.pallas import tpu as pltpu


_LANES = 128
# Pad flat arrays to a multiple of 32*128 elements: keeps every (rows, 128) block's sublane
# count a multiple of the int8 packing tile and removes any shape-divisibility requirement.
_PAD_ELEMS = 32 * _LANES


def _lane_dense(x_flat, dtype):
    """Flatten -> zero-pad to a multiple of _PAD_ELEMS -> lane-dense (rows, 128)."""
    n = x_flat.shape[0]
    pad = (-n) % _PAD_ELEMS
    if pad:
        x_flat = jnp.pad(x_flat, (0, pad))
    return x_flat.astype(dtype).reshape(-1, _LANES)


# ----------------------------------------------------------------------------
# Fused kernel: masked MSE sums + masked relu(density) sums in one invocation
# ----------------------------------------------------------------------------
def _fused_loss_kernel(pred_ref, gt_ref, wimg_ref, raw_ref, wshell_ref, out_ref):
    # out_ref (SMEM, (4,) f32): [0] masked squared-error sum  [1] masked rgb element count
    #                           [2] masked relu(density) sum  [3] masked sample count
    d = pred_ref[...] - gt_ref[...]
    wi = wimg_ref[...].astype(jnp.float32)           # per-element 0/1 weights (mask x channels)
    out_ref[0] = jnp.sum(d * d * wi)
    out_ref[1] = jnp.sum(wi)

    ws = wshell_ref[...].astype(jnp.float32)         # biggerIndex AND (channel == density channel)
    out_ref[2] = jnp.sum(jnp.maximum(raw_ref[...], 0.0) * ws)
    out_ref[3] = jnp.sum(ws)


@jax.jit
def _fused_losses(rgb_map, rgb, mask_at_box, raw, bigger_index):
    c_rgb = rgb_map.shape[-1]
    c_raw = raw.shape[-1]
    n_rays = mask_at_box.size

    pred = _lane_dense(rgb_map.reshape(-1), jnp.float32)
    gt = _lane_dense(rgb.reshape(-1), jnp.float32)
    # per-element 0/1 weight for the rgb MSE (ray mask broadcast over channels, kept at 1 byte)
    wimg = _lane_dense(
        jnp.broadcast_to(mask_at_box.reshape(-1)[:, None], (n_rays, c_rgb)).reshape(-1),
        jnp.int8)

    rawl = _lane_dense(raw.reshape(-1), jnp.float32)
    # per-element weight for the shell loss: biggerIndex AND (channel == last/density channel)
    wshell = _lane_dense(
        jnp.logical_and(bigger_index.reshape(-1)[:, None],
                        (jnp.arange(c_raw) == c_raw - 1)[None, :]).reshape(-1),
        jnp.int8)

    sums = pl.pallas_call(
        _fused_loss_kernel,
        out_shape=jax.ShapeDtypeStruct((4,), jnp.float32),
        grid=(1,),
        in_specs=[
            pl.BlockSpec(pred.shape, lambda i: (0, 0)),
            pl.BlockSpec(gt.shape, lambda i: (0, 0)),
            pl.BlockSpec(wimg.shape, lambda i: (0, 0)),
            pl.BlockSpec(rawl.shape, lambda i: (0, 0)),
            pl.BlockSpec(wshell.shape, lambda i: (0, 0)),
        ],
        out_specs=pl.BlockSpec(memory_space=pltpu.SMEM),
        compiler_params=pltpu.CompilerParams(dimension_semantics=("arbitrary",)),
    )(pred, gt, wimg, rawl, wshell)

    # NOTE: if a mask is all-False the corresponding count is 0 and the mean is NaN,
    # which matches torch's mean over an empty selection.
    img_loss = sums[0] / sums[1]
    shell_loss = sums[2] / sums[3]
    return img_loss, shell_loss


# ----------------------------------------------------------------------------
# NetworkWrapper.forward
# ----------------------------------------------------------------------------
def network_wrapper_forward(ret, batch, cfg):
    # TODO(synk): self.renderer.render(batch) is an external imp.load_source module;
    #             its outputs (rgb_map, raw) are taken as inputs via `ret`.
    rgb_map = ret["rgb_map"]          # (B, N, 3)
    rgb = batch["rgb"]                # (B, N, 3)
    mask = batch["mask_at_box"]       # (B, N) bool

    scalar_stats = {}
    image_stats = {}
    start_loss = cfg.get("start_loss", 0.005)

    if cfg.get("shell_loss") is True:
        raw = ret["raw"]                                  # (B, N, S, 4)
        bigger = batch["biggerIndex"]                     # (B, N, S) bool
        img_loss, shell_loss = _fused_losses(rgb_map, rgb, mask, raw, bigger)
        loss = img_loss
        # torch uses a Python-level `if img_loss <= start_loss`; here it is a traced select.
        loss = loss + jnp.where(img_loss <= start_loss, 0.1 * shell_loss, 0.0)
        scalar_stats["img_loss"] = img_loss
        scalar_stats["shell_loss"] = shell_loss
    else:
        # shell branch disabled: run the same fused kernel with a tiny dummy shell block
        # (negligible extra work) and keep only the image loss.
        dummy_raw = jnp.zeros((_PAD_ELEMS // 4, 4), jnp.float32)
        dummy_big = jnp.ones((_PAD_ELEMS // 4,), jnp.bool_)
        img_loss, _ = _fused_losses(rgb_map, rgb, mask, dummy_raw, dummy_big)
        loss = img_loss
        scalar_stats["img_loss"] = img_loss

    scalar_stats["loss"] = loss
    return ret, loss, scalar_stats, image_stats


# ----------------------------------------------------------------------------
if __name__ == "__main__":
    key = jax.random.PRNGKey(0)
    k1, k2, k3, k4, k5 = jax.random.split(key, 5)

    B, N, S = 2, 512, 8   # batch, rays per batch, samples per ray

    ret = {
        "rgb_map": jax.random.uniform(k1, (B, N, 3), dtype=jnp.float32),
        "raw": jax.random.normal(k2, (B, N, S, 4), dtype=jnp.float32),
    }
    batch = {
        "rgb": jax.random.uniform(k3, (B, N, 3), dtype=jnp.float32),
        "mask_at_box": jax.random.uniform(k4, (B, N)) > 0.5,
        "biggerIndex": jax.random.uniform(k5, (B, N, S)) > 0.5,
    }
    cfg = {"shell_loss": True, "start_loss": 0.005}

    ret_out, loss, scalar_stats, image_stats = network_wrapper_forward(ret, batch, cfg)
    jax.block_until_ready(loss)

    # reference check in plain JAX (same semantics as the torch module)
    mask = batch["mask_at_box"]
    ref_img = jnp.mean((ret["rgb_map"][mask] - batch["rgb"][mask]) ** 2)
    dens = jnp.maximum(ret["raw"].reshape(-1, 4)[batch["biggerIndex"].reshape(-1)][:, -1], 0.0)
    ref_shell = jnp.mean(dens)
    ref_loss = ref_img + jnp.where(ref_img <= cfg["start_loss"], 0.1 * ref_shell, 0.0)

    assert jnp.allclose(scalar_stats["img_loss"], ref_img, rtol=1e-5, atol=1e-5)
    assert jnp.allclose(scalar_stats["shell_loss"], ref_shell, rtol=1e-5, atol=1e-5)
    assert jnp.allclose(loss, ref_loss, rtol=1e-5, atol=1e-5)

    print("KERNEL_OK")
</pallas_src>

<mosaic_0001>
module attributes {stable_mosaic.version = 11 : i64} {
  func.func @_fused_loss_kernel(%arg0: i32, %arg1: memref<32x128xf32, #tpu.memory_space<vmem>>, %arg2: memref<32x128xf32, #tpu.memory_space<vmem>>, %arg3: memref<32x128xi8, #tpu.memory_space<vmem>>, %arg4: memref<256x128xf32, #tpu.memory_space<vmem>>, %arg5: memref<256x128xi8, #tpu.memory_space<vmem>>, %arg6: memref<4xf32, #tpu.memory_space<smem>>) attributes {dimension_semantics = [#tpu.dimension_semantics<arbitrary>], iteration_bounds = array<i64: 1>, scalar_prefetch = 0 : i64, scratch_operands = 0 : i64, tpu.core_type = #tpu.core_type<tc>, window_params = [{pipeline_mode = #tpu.pipeline_mode<synchronous>, transform_indices = @transform_0, window_bounds = array<i64: 32, 128>}, {pipeline_mode = #tpu.pipeline_mode<synchronous>, transform_indices = @transform_1, window_bounds = array<i64: 32, 128>}, {pipeline_mode = #tpu.pipeline_mode<synchronous>, transform_indices = @transform_2, window_bounds = array<i64: 32, 128>}, {pipeline_mode = #tpu.pipeline_mode<synchronous>, transform_indices = @transform_3, window_bounds = array<i64: 256, 128>}, {pipeline_mode = #tpu.pipeline_mode<synchronous>, transform_indices = @transform_4, window_bounds = array<i64: 256, 128>}, {transform_indices = @transform_5, window_bounds = array<i64: 4>}]} {
    %c0 = arith.constant 0 : index
    %c0_0 = arith.constant 0 : index
    %0 = vector.load %arg1[%c0, %c0_0] : memref<32x128xf32, #tpu.memory_space<vmem>>, vector<32x128xf32>
    %c0_1 = arith.constant 0 : index
    %c0_2 = arith.constant 0 : index
    %1 = vector.load %arg2[%c0_1, %c0_2] : memref<32x128xf32, #tpu.memory_space<vmem>>, vector<32x128xf32>
    %2 = arith.subf %0, %1 : vector<32x128xf32>
    %c0_3 = arith.constant 0 : index
    %c0_4 = arith.constant 0 : index
    %3 = vector.load %arg3[%c0_3, %c0_4] : memref<32x128xi8, #tpu.memory_space<vmem>>, vector<32x128xi8>
    %4 = arith.sitofp %3 : vector<32x128xi8> to vector<32x128xf32>
    %5 = arith.mulf %2, %2 : vector<32x128xf32>
    %6 = arith.mulf %5, %4 : vector<32x128xf32>
    %7 = vector.shape_cast %6 : vector<32x128xf32> to vector<1x32x128xf32>
    %cst = arith.constant dense<0.000000e+00> : vector<1xf32>
    %8 = vector.multi_reduction <add>, %7, %cst [1, 2] : vector<1x32x128xf32> to vector<1xf32>
    %9 = vector.shape_cast %8 : vector<1xf32> to vector<1x1x1xf32>
    %10 = vector.extract %9[0, 0, 0] : f32 from vector<1x1x1xf32>
    %c0_5 = arith.constant 0 : index
    %11 = memref.load %arg6[%c0_5] : memref<4xf32, #tpu.memory_space<smem>>
    memref.store %10, %arg6[%c0_5] : memref<4xf32, #tpu.memory_space<smem>>
    %12 = vector.shape_cast %4 : vector<32x128xf32> to vector<1x32x128xf32>
    %cst_6 = arith.constant dense<0.000000e+00> : vector<1xf32>
    %13 = vector.multi_reduction <add>, %12, %cst_6 [1, 2] : vector<1x32x128xf32> to vector<1xf32>
    %14 = vector.shape_cast %13 : vector<1xf32> to vector<1x1x1xf32>
    %15 = vector.extract %14[0, 0, 0] : f32 from vector<1x1x1xf32>
    %c1 = arith.constant 1 : index
    %16 = memref.load %arg6[%c1] : memref<4xf32, #tpu.memory_space<smem>>
    memref.store %15, %arg6[%c1] : memref<4xf32, #tpu.memory_space<smem>>
    %c0_7 = arith.constant 0 : index
    %c0_8 = arith.constant 0 : index
    %17 = vector.load %arg5[%c0_7, %c0_8] : memref<256x128xi8, #tpu.memory_space<vmem>>, vector<256x128xi8>
    %18 = arith.sitofp %17 : vector<256x128xi8> to vector<256x128xf32>
    %c0_9 = arith.constant 0 : index
    %c0_10 = arith.constant 0 : index
    %19 = vector.load %arg4[%c0_9, %c0_10] : memref<256x128xf32, #tpu.memory_space<vmem>>, vector<256x128xf32>
    %cst_11 = arith.constant 0.000000e+00 : f32
    %20 = vector.broadcast %cst_11 : f32 to vector<256x128xf32>
    %21 = arith.maximumf %19, %20 : vector<256x128xf32>
    %22 = arith.mulf %21, %18 : vector<256x128xf32>
    %23 = vector.shape_cast %22 : vector<256x128xf32> to vector<1x256x128xf32>
    %cst_12 = arith.constant dense<0.000000e+00> : vector<1xf32>
    %24 = vector.multi_reduction <add>, %23, %cst_12 [1, 2] : vector<1x256x128xf32> to vector<1xf32>
    %25 = vector.shape_cast %24 : vector<1xf32> to vector<1x1x1xf32>
    %26 = vector.extract %25[0, 0, 0] : f32 from vector<1x1x1xf32>
    %c2 = arith.constant 2 : index
    %27 = memref.load %arg6[%c2] : memref<4xf32, #tpu.memory_space<smem>>
    memref.store %26, %arg6[%c2] : memref<4xf32, #tpu.memory_space<smem>>
    %28 = vector.shape_cast %18 : vector<256x128xf32> to vector<1x256x128xf32>
    %cst_13 = arith.constant dense<0.000000e+00> : vector<1xf32>
    %29 = vector.multi_reduction <add>, %28, %cst_13 [1, 2] : vector<1x256x128xf32> to vector<1xf32>
    %30 = vector.shape_cast %29 : vector<1xf32> to vector<1x1x1xf32>
    %31 = vector.extract %30[0, 0, 0] : f32 from vector<1x1x1xf32>
    %c3 = arith.constant 3 : index
    %32 = memref.load %arg6[%c3] : memref<4xf32, #tpu.memory_space<smem>>
    memref.store %31, %arg6[%c3] : memref<4xf32, #tpu.memory_space<smem>>
    return
  }
  func.func @transform_0(%arg0: i32) -> (i32, i32) {
    %c0_i32 = arith.constant 0 : i32
    %c0_i32_0 = arith.constant 0 : i32
    %c0_i32_1 = arith.constant 0 : i32
    return %c0_i32, %c0_i32_0 : i32, i32
  }
  func.func @transform_1(%arg0: i32) -> (i32, i32) {
    %c0_i32 = arith.constant 0 : i32
    %c0_i32_0 = arith.constant 0 : i32
    %c0_i32_1 = arith.constant 0 : i32
    return %c0_i32, %c0_i32_0 : i32, i32
  }
  func.func @transform_2(%arg0: i32) -> (i32, i32) {
    %c0_i32 = arith.constant 0 : i32
    %c0_i32_0 = arith.constant 0 : i32
    %c0_i32_1 = arith.constant 0 : i32
    return %c0_i32, %c0_i32_0 : i32, i32
  }
  func.func @transform_3(%arg0: i32) -> (i32, i32) {
    %c0_i32 = arith.constant 0 : i32
    %c0_i32_0 = arith.constant 0 : i32
    %c0_i32_1 = arith.constant 0 : i32
    return %c0_i32, %c0_i32_0 : i32, i32
  }
  func.func @transform_4(%arg0: i32) -> (i32, i32) {
    %c0_i32 = arith.constant 0 : i32
    %c0_i32_0 = arith.constant 0 : i32
    %c0_i32_1 = arith.constant 0 : i32
    return %c0_i32, %c0_i32_0 : i32, i32
  }
  func.func @transform_5(%arg0: i32) -> i32 {
    %c0_i32 = arith.constant 0 : i32
    %c0_i32_0 = arith.constant 0 : i32
    return %c0_i32 : i32
  }
}

</mosaic_0001>

<llo_original>
// kernel: _fused_losses.1
$region0: #{_fused_losses.1}
  #allocation0 [shape = 'u32[]', space=smem, size = 0x4, offset = 0x4, fixed_abs, tag = 'smem constant byte address 0x4 - core index']
  #allocation1 [shape = 'u32[144,128]{1,0:T(1,128)}', space=vmem, size = 0x12000, scoped, tag = 'internal scratch']
  %s0 = inlined_call_operand.vmem [shape: f32[32,128], index: 0, kind: input, shape index: {}]
  %s1 = inlined_call_operand.vmem [shape: f32[32,128], index: 1, kind: input, shape index: {}]
  %s2 = inlined_call_operand.vmem [shape: s8[32,128], index: 2, kind: input, shape index: {}]
  %s3 = inlined_call_operand.vmem [shape: f32[256,128], index: 3, kind: input, shape index: {}]
  %s4 = inlined_call_operand.vmem [shape: s8[256,128], index: 4, kind: input, shape index: {}]
  %s5 = inlined_call_operand.vmem [shape: f32[4], index: 5, kind: output, shape index: {}]
  %s6 = sld [smem:[#allocation0]]
  $region30: #{_fused_losses.1} parent=0
    _
  %s8 = ssub.s32 1, %s6
  %s9 = scalar_select 0, %s8, %s6
  $region1: #{_fused_losses.1} parent=0
    #allocation2 [shape = 'u8[512]{0}', space=smem, size = 0x200, scoped, tag = 'output window, operand 0, single buffered']
    #allocation3 [shape = 's32[1]{0}', space=sflag, size = 0x4, scoped, tag = 'scoped memory for _fused_losses.1']
    %10 = vsyncpa [#allocation3], 0
    // Predicated region
    $region2: #{_fused_losses.1} parent=1 // pred_check
      _
    $region3: #{_fused_losses.1} parent=1 // pred_check_branch
      %12 = sbr.rel (0) target = $region5
    $region4: #{_fused_losses.1} parent=1 // pred_region
      _
    $region5: #{_fused_losses.1} parent=1 // pred_fallthru
      _
    // Predicated region
    $region6: #{_fused_losses.1} parent=1 // pred_check
      _
    $region7: #{_fused_losses.1} parent=1 // pred_check_branch
      %14 = sbr.rel (0) target = $region9
    $region8: #{_fused_losses.1} parent=1 // pred_region
      _
    $region9: #{_fused_losses.1} parent=1 // pred_fallthru
      _
    // Predicated region
    $region10: #{_fused_losses.1} parent=1 // pred_check
      _
    $region11: #{_fused_losses.1} parent=1 // pred_check_branch
      %16 = sbr.rel (0) target = $region13
    $region12: #{_fused_losses.1} parent=1 // pred_region
      _
    $region13: #{_fused_losses.1} parent=1 // pred_fallthru
      _
    // Predicated region
    $region14: #{_fused_losses.1} parent=1 // pred_check
      _
    $region15: #{_fused_losses.1} parent=1 // pred_check_branch
      %18 = sbr.rel (0) target = $region17
    $region16: #{_fused_losses.1} parent=1 // pred_region
      _
    $region17: #{_fused_losses.1} parent=1 // pred_fallthru
      _
    // Predicated region
    $region18: #{_fused_losses.1} parent=1 // pred_check
      _
    $region19: #{_fused_losses.1} parent=1 // pred_check_branch
      %20 = sbr.rel (0) target = $region21
    $region20: #{_fused_losses.1} parent=1 // pred_region
      _
    $region21: #{_fused_losses.1} parent=1 // pred_fallthru
      _
    %v21 = vld [vmem:[%s0] sm:$0xff]
    %v22 = vld [vmem:[%s0 + $0x8] sm:$0xff]
    %v23 = vld [vmem:[%s0 + $0x10] sm:$0xff]
    %v24 = vld [vmem:[%s0 + $0x18] sm:$0xff]
    %v25 = vld [vmem:[%s1] sm:$0xff]
    %v26 = vld [vmem:[%s1 + $0x8] sm:$0xff]
    %v27 = vld [vmem:[%s1 + $0x10] sm:$0xff]
    %v28 = vld [vmem:[%s1 + $0x18] sm:$0xff]
    %v29 = vsub.f32 %v21, %v25
    %v30 = vsub.f32 %v22, %v26
    %v31 = vsub.f32 %v23, %v27
    %v32 = vsub.f32 %v24, %v28
    %v33 = vld [vmem:[%s2] sm:$0xff]
    %v34 = vunpack.c.0.s8 %v33
    %v35 = vunpack.c.1.s8 %v33
    %v36 = vunpack.c.2.s8 %v33
    %v37 = vunpack.c.3.s8 %v33
    %v38 = vcvt.s32.f32 %v34
    %v39 = vcvt.s32.f32 %v35
    %v40 = vcvt.s32.f32 %v36
    %v41 = vcvt.s32.f32 %v37
    %v42 = vmul.f32 %v29, %v29
    %v43 = vmul.f32 %v30, %v30
    %v44 = vmul.f32 %v31, %v31
    %v45 = vmul.f32 %v32, %v32
    %v46 = vmul.f32 %v42, %v38
    %v47 = vmul.f32 %v43, %v39
    %v48 = vmul.f32 %v44, %v40
    %v49 = vmul.f32 %v45, %v41
    %v50 = vadd.f32 %v46, %v47
    %v51 = vadd.f32 %v50, %v48
    %v52 = vadd.f32 %v51, %v49
    %53 = vadd.xlane.f32.xlu0 %v52
    %v54 = vpop.xlane.xlu0 %53
    %v55 = vrot.slane %v54, 4
    %v56 = vadd.f32 %v54, %v55
    %v57 = vrot.slane %v56, 2
    %v58 = vadd.f32 %v56, %v57
    %v59 = vrot.slane %v58, 1
    %v60 = vadd.f32 %v58, %v59
    %s61 = vtos %v60
    %s62 = scalar_lea.smem [#allocation2], 0
    %63 = sst [smem:[%s62]] %s61
    %v64 = vadd.f32 %v38, %v39
    %v65 = vadd.f32 %v64, %v40
    %v66 = vadd.f32 %v65, %v41
    %67 = vadd.xlane.f32.xlu0 %v66
    %v68 = vpop.xlane.xlu0 %67
    %v69 = vrot.slane %v68, 4
    %v70 = vadd.f32 %v68, %v69
    %v71 = vrot.slane %v70, 2
    %v72 = vadd.f32 %v70, %v71
    %v73 = vrot.slane %v72, 1
    %v74 = vadd.f32 %v72, %v73
    %s75 = vtos %v74
    %s76 = scalar_lea.smem [#allocation2], 1
    %77 = sst [smem:[%s76]] %s75
    %v78 = vld [vmem:[%s4] sm:$0xff]
    %v79 = vld [vmem:[%s4 + $0x8] sm:$0xff]
    %v80 = vld [vmem:[%s4 + $0x10] sm:$0xff]
    %v81 = vld [vmem:[%s4 + $0x18] sm:$0xff]
    %v82 = vld [vmem:[%s4 + $0x20] sm:$0xff]
    %v83 = vld [vmem:[%s4 + $0x28] sm:$0xff]
    %v84 = vld [vmem:[%s4 + $0x30] sm:$0xff]
    %v85 = vld [vmem:[%s4 + $0x38] sm:$0xff]
    %v86 = vunpack.c.0.s8 %v78
    %v87 = vunpack.c.1.s8 %v78
    %v88 = vunpack.c.2.s8 %v78
    %v89 = vunpack.c.3.s8 %v78
    %v90 = vunpack.c.0.s8 %v79
    %v91 = vunpack.c.1.s8 %v79
    %v92 = vunpack.c.2.s8 %v79
    %v93 = vunpack.c.3.s8 %v79
    %v94 = vunpack.c.0.s8 %v80
    %v95 = vunpack.c.1.s8 %v80
    %v96 = vunpack.c.2.s8 %v80
    %v97 = vunpack.c.3.s8 %v80
    %v98 = vunpack.c.0.s8 %v81
    %v99 = vunpack.c.1.s8 %v81
    %v100 = vunpack.c.2.s8 %v81
    %v101 = vunpack.c.3.s8 %v81
    %v102 = vunpack.c.0.s8 %v82
    %v103 = vunpack.c.1.s8 %v82
    %v104 = vunpack.c.2.s8 %v82
    %v105 = vunpack.c.3.s8 %v82
    %v106 = vunpack.c.0.s8 %v83
    %v107 = vunpack.c.1.s8 %v83
    %v108 = vunpack.c.2.s8 %v83
    %v109 = vunpack.c.3.s8 %v83
    %v110 = vunpack.c.0.s8 %v84
    %v111 = vunpack.c.1.s8 %v84
    %v112 = vunpack.c.2.s8 %v84
    %v113 = vunpack.c.3.s8 %v84
    %v114 = vunpack.c.0.s8 %v85
    %v115 = vunpack.c.1.s8 %v85
    %v116 = vunpack.c.2.s8 %v85
    %v117 = vunpack.c.3.s8 %v85
    %v118 = vcvt.s32.f32 %v86
    %v119 = vcvt.s32.f32 %v87
    %v120 = vcvt.s32.f32 %v88
    %v121 = vcvt.s32.f32 %v89
    %v122 = vcvt.s32.f32 %v90
    %v123 = vcvt.s32.f32 %v91
    %v124 = vcvt.s32.f32 %v92
    %v125 = vcvt.s32.f32 %v93
    %v126 = vcvt.s32.f32 %v94
    %v127 = vcvt.s32.f32 %v95
    %v128 = vcvt.s32.f32 %v96
    %v129 = vcvt.s32.f32 %v97
    %v130 = vcvt.s32.f32 %v98
    %v131 = vcvt.s32.f32 %v99
    %v132 = vcvt.s32.f32 %v100
    %v133 = vcvt.s32.f32 %v101
    %v134 = vcvt.s32.f32 %v102
    %v135 = vcvt.s32.f32 %v103
    %v136 = vcvt.s32.f32 %v104
    %v137 = vcvt.s32.f32 %v105
    %v138 = vcvt.s32.f32 %v106
    %v139 = vcvt.s32.f32 %v107
    %v140 = vcvt.s32.f32 %v108
    %v141 = vcvt.s32.f32 %v109
    %v142 = vcvt.s32.f32 %v110
    %v143 = vcvt.s32.f32 %v111
    %v144 = vcvt.s32.f32 %v112
    %v145 = vcvt.s32.f32 %v113
    %v146 = vcvt.s32.f32 %v114
    %v147 = vcvt.s32.f32 %v115
    %v148 = vcvt.s32.f32 %v116
    %v149 = vcvt.s32.f32 %v117
    %v150 = vld [vmem:[%s3] sm:$0xff]
    %v151 = vld [vmem:[%s3 + $0x8] sm:$0xff]
    %v152 = vld [vmem:[%s3 + $0x10] sm:$0xff]
    %v153 = vld [vmem:[%s3 + $0x18] sm:$0xff]
    %v154 = vld [vmem:[%s3 + $0x20] sm:$0xff]
    %v155 = vld [vmem:[%s3 + $0x28] sm:$0xff]
    %v156 = vld [vmem:[%s3 + $0x30] sm:$0xff]
    %v157 = vld [vmem:[%s3 + $0x38] sm:$0xff]
    %v158 = vld [vmem:[%s3 + $0x40] sm:$0xff]
    %v159 = vld [vmem:[%s3 + $0x48] sm:$0xff]
    %v160 = vld [vmem:[%s3 + $0x50] sm:$0xff]
    %v161 = vld [vmem:[%s3 + $0x58] sm:$0xff]
    %v162 = vld [vmem:[%s3 + $0x60] sm:$0xff]
    %v163 = vld [vmem:[%s3 + $0x68] sm:$0xff]
    %v164 = vld [vmem:[%s3 + $0x70] sm:$0xff]
    %v165 = vld [vmem:[%s3 + $0x78] sm:$0xff]
    %v166 = vld [vmem:[%s3 + $0x80] sm:$0xff]
    %v167 = vld [vmem:[%s3 + $0x88] sm:$0xff]
    %v168 = vld [vmem:[%s3 + $0x90] sm:$0xff]
    %v169 = vld [vmem:[%s3 + $0x98] sm:$0xff]
    %v170 = vld [vmem:[%s3 + $0xa0] sm:$0xff]
    %v171 = vld [vmem:[%s3 + $0xa8] sm:$0xff]
    %v172 = vld [vmem:[%s3 + $0xb0] sm:$0xff]
    %v173 = vld [vmem:[%s3 + $0xb8] sm:$0xff]
    %v174 = vld [vmem:[%s3 + $0xc0] sm:$0xff]
    %v175 = vld [vmem:[%s3 + $0xc8] sm:$0xff]
    %v176 = vld [vmem:[%s3 + $0xd0] sm:$0xff]
    %v177 = vld [vmem:[%s3 + $0xd8] sm:$0xff]
    %v178 = vld [vmem:[%s3 + $0xe0] sm:$0xff]
    %v179 = vld [vmem:[%s3 + $0xe8] sm:$0xff]
    %v180 = vld [vmem:[%s3 + $0xf0] sm:$0xff]
    %v181 = vld [vmem:[%s3 + $0xf8] sm:$0xff]
    %v182 = vmax.f32 %v150, 0.0
    %v183 = vmax.f32 %v151, 0.0
    %v184 = vmax.f32 %v152, 0.0
    %v185 = vmax.f32 %v153, 0.0
    %v186 = vmax.f32 %v154, 0.0
    %v187 = vmax.f32 %v155, 0.0
    %v188 = vmax.f32 %v156, 0.0
    %v189 = vmax.f32 %v157, 0.0
    %v190 = vmax.f32 %v158, 0.0
    %v191 = vmax.f32 %v159, 0.0
    %v192 = vmax.f32 %v160, 0.0
    %v193 = vmax.f32 %v161, 0.0
    %v194 = vmax.f32 %v162, 0.0
    %v195 = vmax.f32 %v163, 0.0
    %v196 = vmax.f32 %v164, 0.0
    %v197 = vmax.f32 %v165, 0.0
    %v198 = vmax.f32 %v166, 0.0
    %v199 = vmax.f32 %v167, 0.0
    %v200 = vmax.f32 %v168, 0.0
    %v201 = vmax.f32 %v169, 0.0
    %v202 = vmax.f32 %v170, 0.0
    %v203 = vmax.f32 %v171, 0.0
    %v204 = vmax.f32 %v172, 0.0
    %v205 = vmax.f32 %v173, 0.0
    %v206 = vmax.f32 %v174, 0.0
    %v207 = vmax.f32 %v175, 0.0
    %v208 = vmax.f32 %v176, 0.0
    %v209 = vmax.f32 %v177, 0.0
    %v210 = vmax.f32 %v178, 0.0
    %v211 = vmax.f32 %v179, 0.0
    %v212 = vmax.f32 %v180, 0.0
    %v213 = vmax.f32 %v181, 0.0
    %v214 = vmul.f32 %v182, %v118
    %v215 = vmul.f32 %v183, %v119
    %v216 = vmul.f32 %v184, %v120
    %v217 = vmul.f32 %v185, %v121
    %v218 = vmul.f32 %v186, %v122
    %v219 = vmul.f32 %v187, %v123
    %v220 = vmul.f32 %v188, %v124
    %v221 = vmul.f32 %v189, %v125
    %v222 = vmul.f32 %v190, %v126
    %v223 = vmul.f32 %v191, %v127
    %v224 = vmul.f32 %v192, %v128
    %v225 = vmul.f32 %v193, %v129
    %v226 = vmul.f32 %v194, %v130
    %v227 = vmul.f32 %v195, %v131
    %v228 = vmul.f32 %v196, %v132
    %v229 = vmul.f32 %v197, %v133
    %v230 = vmul.f32 %v198, %v134
    %v231 = vmul.f32 %v199, %v135
    %v232 = vmul.f32 %v200, %v136
    %v233 = vmul.f32 %v201, %v137
    %v234 = vmul.f32 %v202, %v138
    %v235 = vmul.f32 %v203, %v139
    %v236 = vmul.f32 %v204, %v140
    %v237 = vmul.f32 %v205, %v141
    %v238 = vmul.f32 %v206, %v142
    %v239 = vmul.f32 %v207, %v143
    %v240 = vmul.f32 %v208, %v144
    %v241 = vmul.f32 %v209, %v145
    %v242 = vmul.f32 %v210, %v146
    %v243 = vmul.f32 %v211, %v147
    %v244 = vmul.f32 %v212, %v148
    %v245 = vmul.f32 %v213, %v149
    %v246 = vadd.f32 %v214, %v215
    %v247 = vadd.f32 %v246, %v216
    %v248 = vadd.f32 %v247, %v217
    %v249 = vadd.f32 %v248, %v218
    %v250 = vadd.f32 %v249, %v219
    %v251 = vadd.f32 %v250, %v220
    %v252 = vadd.f32 %v251, %v221
    %v253 = vadd.f32 %v252, %v222
    %v254 = vadd.f32 %v253, %v223
    %v255 = vadd.f32 %v254, %v224
    %v256 = vadd.f32 %v255, %v225
    %v257 = vadd.f32 %v256, %v226
    %v258 = vadd.f32 %v257, %v227
    %v259 = vadd.f32 %v258, %v228
    %v260 = vadd.f32 %v259, %v229
    %v261 = vadd.f32 %v260, %v230
    %v262 = vadd.f32 %v261, %v231
    %v263 = vadd.f32 %v262, %v232
    %v264 = vadd.f32 %v263, %v233
    %v265 = vadd.f32 %v264, %v234
    %v266 = vadd.f32 %v265, %v235
    %v267 = vadd.f32 %v266, %v236
    %v268 = vadd.f32 %v267, %v237
    %v269 = vadd.f32 %v268, %v238
    %v270 = vadd.f32 %v269, %v239
    %v271 = vadd.f32 %v270, %v240
    %v272 = vadd.f32 %v271, %v241
    %v273 = vadd.f32 %v272, %v242
    %v274 = vadd.f32 %v273, %v243
    %v275 = vadd.f32 %v274, %v244
    %v276 = vadd.f32 %v275, %v245
    %277 = vadd.xlane.f32.xlu0 %v276
    %v278 = vpop.xlane.xlu0 %277
    %v279 = vrot.slane %v278, 4
    %v280 = vadd.f32 %v278, %v279
    %v281 = vrot.slane %v280, 2
    %v282 = vadd.f32 %v280, %v281
    %v283 = vrot.slane %v282, 1
    %v284 = vadd.f32 %v282, %v283
    %s285 = vtos %v284
    %s286 = scalar_lea.smem [#allocation2], 2
    %287 = sst [smem:[%s286]] %s285
    %v288 = vadd.f32 %v118, %v119
    %v289 = vadd.f32 %v288, %v120
    %v290 = vadd.f32 %v289, %v121
    %v291 = vadd.f32 %v290, %v122
    %v292 = vadd.f32 %v291, %v123
    %v293 = vadd.f32 %v292, %v124
    %v294 = vadd.f32 %v293, %v125
    %v295 = vadd.f32 %v294, %v126
    %v296 = vadd.f32 %v295, %v127
    %v297 = vadd.f32 %v296, %v128
    %v298 = vadd.f32 %v297, %v129
    %v299 = vadd.f32 %v298, %v130
    %v300 = vadd.f32 %v299, %v131
    %v301 = vadd.f32 %v300, %v132
    %v302 = vadd.f32 %v301, %v133
    %v303 = vadd.f32 %v302, %v134
    %v304 = vadd.f32 %v303, %v135
    %v305 = vadd.f32 %v304, %v136
    %v306 = vadd.f32 %v305, %v137
    %v307 = vadd.f32 %v306, %v138
    %v308 = vadd.f32 %v307, %v139
    %v309 = vadd.f32 %v308, %v140
    %v310 = vadd.f32 %v309, %v141
    %v311 = vadd.f32 %v310, %v142
    %v312 = vadd.f32 %v311, %v143
    %v313 = vadd.f32 %v312, %v144
    %v314 = vadd.f32 %v313, %v145
    %v315 = vadd.f32 %v314, %v146
    %v316 = vadd.f32 %v315, %v147
    %v317 = vadd.f32 %v316, %v148
    %v318 = vadd.f32 %v317, %v149
    %319 = vadd.xlane.f32.xlu0 %v318
    %v320 = vpop.xlane.xlu0 %319
    %v321 = vrot.slane %v320, 4
    %v322 = vadd.f32 %v320, %v321
    %v323 = vrot.slane %v322, 2
    %v324 = vadd.f32 %v322, %v323
    %v325 = vrot.slane %v324, 1
    %v326 = vadd.f32 %v324, %v325
    %s327 = vtos %v326
    %s328 = scalar_lea.smem [#allocation2], 3
    %329 = sst [smem:[%s328]] %s327
    // Predicated region
    $region22: #{_fused_losses.1} parent=1 // pred_check
      _
    $region23: #{_fused_losses.1} parent=1 // pred_check_branch
      %331 = sbr.rel (0) target = $region25
    $region24: #{_fused_losses.1} parent=1 // pred_region
      %s333 = ssub.s32 16, 16
      %334 = vsyncadd [#allocation3], %s333
      %s336 = sshll.u32 %s5, 4
      %s337 = int_to_ptr.vmem [resolvable:$true] %s336
      %339 = dma.smem_to_vmem [#allocation2], 16, %s337, [#allocation3]
    $region25: #{_fused_losses.1} parent=1 // pred_fallthru
      _
    // Predicated region
    $region26: #{_fused_losses.1} parent=1 // pred_check
      _
    $region27: #{_fused_losses.1} parent=1 // pred_check_branch
      %341 = sbr.rel (0) target = $region29
    $region28: #{_fused_losses.1} parent=1 // pred_region
      %342 = dma.done [#allocation3], 16
    $region29: #{_fused_losses.1} parent=1 // pred_fallthru
      _
    %343 = sfence
    %344 = vsyncpa [#allocation3], 1

</llo_original>
